<compile_context>
chip_gen: v6e
topology: v6e:2x2x1
jax: 0.10.0
libtpu: 0.0.40
codegen_flags: <defaults>
</compile_context>

<pallas_src>
import jax
import jax.numpy as jnp
from jax import lax
from jax.experimental import pallas as pl
from jax.experimental.pallas import tpu as pltpu


_LANE = 128      # TPU lane width (last dim)
_SUBLANE = 8     # f32 sublane width (second-to-last dim)


def _round_up(n, m):
    return ((n + m - 1) // m) * m


def _pad_to(x, axis, target):
    pad = target - x.shape[axis]
    if pad == 0:
        return x
    widths = [(0, 0)] * x.ndim
    widths[axis] = (0, pad)
    return jnp.pad(x, widths)


def _layer_seeds(base_seed, num_layers):
    # Distinct, well-separated, int32-safe per-layer seeds (no collisions
    # across layers regardless of grid size).
    return [int((base_seed + (li + 1) * 2654435761) % (2 ** 31))
            for li in range(num_layers)]


def _keep_mask(rows, cols, seed_u32):
    """Deterministic per-element Bernoulli(0.5) keep mask.

    Counter-based 32-bit hash of (row, col, seed). The same function is used
    by the in-kernel dropout and by the pure-JAX reference, so they match.
    """
    h = (rows.astype(jnp.uint32) * jnp.uint32(0x9E3779B1)
         ^ cols.astype(jnp.uint32) * jnp.uint32(0x85EBCA77))
    h = h + seed_u32 * jnp.uint32(0xC2B2AE3D)
    # murmur3-style finalizer
    h = h ^ (h >> 16)
    h = h * jnp.uint32(0x7FEB352D)
    h = h ^ (h >> 15)
    h = h * jnp.uint32(0x846CA68B)
    h = h ^ (h >> 16)
    return (h & jnp.uint32(1)) == jnp.uint32(0)


def _dropout_half(y, row_offset, seed_i32):
    """Inverted dropout, p=0.5: keep w.p. 0.5 and scale kept values by 2."""
    m, n = y.shape
    rows = lax.broadcasted_iota(jnp.int32, (m, n), 0) + row_offset
    cols = lax.broadcasted_iota(jnp.int32, (m, n), 1)
    keep = _keep_mask(rows, cols, seed_i32.astype(jnp.uint32))
    return jnp.where(keep, y * 2.0, 0.0)


def _make_prenet_kernel(num_layers):
    def kernel(seed_ref, x_ref, *rest):
        # seed_ref: SMEM (num_layers,) int32 (scalar prefetch)
        # x_ref: (tm, Din_pad) compute dtype
        # rest[:num_layers]: weight refs (Din_pad_l, Dout_pad_l)
        # rest[num_layers]: output ref (tm, Dout_pad_last)
        w_refs = rest[:num_layers]
        o_ref = rest[num_layers]
        tm = x_ref.shape[0]
        row0 = pl.program_id(0) * tm          # global row offset of this tile

        h = x_ref[...]
        for li in range(num_layers):
            # Linear (no bias) on the MXU with f32 accumulation.
            y = jnp.dot(h.astype(w_refs[li].dtype), w_refs[li][...],
                        preferred_element_type=jnp.float32)
            # ReLU + dropout(p=0.5, training=True) on the VPU.
            y = jnp.maximum(y, 0.0)
            y = _dropout_half(y, row0, seed_ref[li])
            h = y
        o_ref[...] = h.astype(o_ref.dtype)
    return kernel


def prenet_forward(x, weights, base_seed=0, *, tm=256,
                   compute_dtype=jnp.bfloat16):
    """x: [B, T, in_dim]; weights: list of [in, out] matrices (bias-free)."""
    B, T, Din = x.shape
    num_layers = len(weights)
    assert num_layers >= 1 and weights[0].shape[0] == Din
    Dout = weights[-1].shape[1]
    M = B * T

    # --- Pad feature dims to lane width (exact: zero padding) and cast. ---
    din_pad = _round_up(Din, _LANE)
    h = _pad_to(x.reshape(M, Din), 1, din_pad).astype(compute_dtype)

    w_padded = []
    prev = din_pad
    for w in weights:
        d_in, d_out = w.shape
        d_out_pad = _round_up(d_out, _LANE)
        wp = jnp.zeros((prev, d_out_pad), compute_dtype)
        wp = wp.at[:d_in, :d_out].set(w.astype(compute_dtype))
        w_padded.append(wp)
        prev = d_out_pad
    dout_pad = prev

    # --- Row tiling: large, sublane/MXU-aligned tiles; pad M so grid is exact.
    tm_eff = min(tm, _round_up(M, _SUBLANE))
    m_pad = _round_up(M, tm_eff)
    h = _pad_to(h, 0, m_pad)
    grid = (m_pad // tm_eff,)

    seeds = jnp.asarray(_layer_seeds(base_seed, num_layers), dtype=jnp.int32)

    in_specs = [pl.BlockSpec((tm_eff, din_pad), lambda i, *_: (i, 0))]
    for wp in w_padded:
        in_specs.append(pl.BlockSpec(wp.shape, lambda i, *_: (0, 0)))
    out_spec = pl.BlockSpec((tm_eff, dout_pad), lambda i, *_: (i, 0))

    out = pl.pallas_call(
        _make_prenet_kernel(num_layers),
        out_shape=jax.ShapeDtypeStruct((m_pad, dout_pad), x.dtype),
        grid_spec=pltpu.PrefetchScalarGridSpec(
            num_scalar_prefetch=1,
            grid=grid,
            in_specs=in_specs,
            out_specs=out_spec,
        ),
        compiler_params=pltpu.CompilerParams(
            dimension_semantics=("parallel",),
        ),
    )(seeds, h, *w_padded)

    return out[:M, :Dout].reshape(B, T, Dout)


def prenet_reference(x, weights, base_seed=0, compute_dtype=jnp.bfloat16):
    """Pure-JAX reference using the same deterministic dropout mask."""
    B, T, Din = x.shape
    M = B * T
    seeds = _layer_seeds(base_seed, len(weights))
    h = x.reshape(M, Din)
    for li, w in enumerate(weights):
        y = jnp.dot(h.astype(compute_dtype), w.astype(compute_dtype),
                    preferred_element_type=jnp.float32)
        y = jnp.maximum(y, 0.0)
        rows = lax.broadcasted_iota(jnp.int32, y.shape, 0)
        cols = lax.broadcasted_iota(jnp.int32, y.shape, 1)
        keep = _keep_mask(rows, cols, jnp.uint32(seeds[li]))
        h = jnp.where(keep, y * 2.0, 0.0)
    return h.reshape(B, T, -1)


def init_prenet_weights(key, in_dim, sizes):
    """Deterministic xavier-uniform init (gain=1), matching LinearNorm(bias=False)."""
    in_sizes = [in_dim] + sizes[:-1]
    weights = []
    for i, (d_in, d_out) in enumerate(zip(in_sizes, sizes)):
        k = jax.random.fold_in(key, i)
        limit = (6.0 / (d_in + d_out)) ** 0.5
        # stored as [in, out] so the kernel computes x @ W directly
        w = jax.random.uniform(k, (d_in, d_out), jnp.float32, -limit, limit)
        weights.append(w)
    return weights


if __name__ == "__main__":
    key = jax.random.PRNGKey(0)
    kx, kw = jax.random.split(key)

    B, T, in_dim = 2, 8, 32
    sizes = [32, 32]          # Prenet(in_dim=32, sizes=[32, 32]) -> two layers

    x = jax.random.normal(kx, (B, T, in_dim), dtype=jnp.float32)
    weights = init_prenet_weights(kw, in_dim, sizes)

    out = prenet_forward(x, weights, base_seed=123)
    out = jax.block_until_ready(out)

    ref = prenet_reference(x, weights, base_seed=123)

    assert out.shape == (B, T, sizes[-1])
    assert bool(jnp.all(out >= 0.0))                 # relu -> dropout keeps >= 0
    assert bool(jnp.allclose(out, ref, rtol=5e-2, atol=5e-2))
    print("KERNEL_OK")
</pallas_src>

<mosaic_0001>
module attributes {stable_mosaic.version = 11 : i64} {
  func.func @kernel(%arg0: i32, %arg1: memref<2xi32, #tpu.memory_space<smem>>, %arg2: memref<16x128xbf16, #tpu.memory_space<vmem>>, %arg3: memref<128x128xbf16, #tpu.memory_space<vmem>>, %arg4: memref<128x128xbf16, #tpu.memory_space<vmem>>, %arg5: memref<16x128xf32, #tpu.memory_space<vmem>>) attributes {dimension_semantics = [#tpu.dimension_semantics<parallel>], iteration_bounds = array<i64: 1>, scalar_prefetch = 1 : i64, scratch_operands = 0 : i64, tpu.core_type = #tpu.core_type<tc>, window_params = [{transform_indices = @transform_0, window_bounds = array<i64: 16, 128>}, {pipeline_mode = #tpu.pipeline_mode<synchronous>, transform_indices = @transform_1, window_bounds = array<i64: 128, 128>}, {pipeline_mode = #tpu.pipeline_mode<synchronous>, transform_indices = @transform_2, window_bounds = array<i64: 128, 128>}, {transform_indices = @transform_3, window_bounds = array<i64: 16, 128>}]} {
    %c16_i32 = arith.constant 16 : i32
    %0 = arith.muli %arg0, %c16_i32 : i32
    %c0 = arith.constant 0 : index
    %c0_0 = arith.constant 0 : index
    %1 = vector.load %arg2[%c0, %c0_0] : memref<16x128xbf16, #tpu.memory_space<vmem>>, vector<16x128xbf16>
    %c0_1 = arith.constant 0 : index
    %c0_2 = arith.constant 0 : index
    %2 = vector.load %arg3[%c0_1, %c0_2] : memref<128x128xbf16, #tpu.memory_space<vmem>>, vector<128x128xbf16>
    %cst = arith.constant dense<0.000000e+00> : vector<16x128xf32>
    %3 = tpu.matmul %1, %2, %cst {dimension_numbers = #tpu.dot_dimension_numbers<[1], [0], [0], [1], [0, 0, 1, 1], [], []>} : vector<16x128xbf16>, vector<128x128xbf16>, vector<16x128xf32> -> vector<16x128xf32>
    %cst_3 = arith.constant 0.000000e+00 : f32
    %4 = vector.broadcast %cst_3 : f32 to vector<16x128xf32>
    %5 = arith.maximumf %3, %4 : vector<16x128xf32>
    %c0_4 = arith.constant 0 : index
    %6 = memref.load %arg1[%c0_4] : memref<2xi32, #tpu.memory_space<smem>>
    %7 = tpu.iota {dimensions = array<i32: 0>} : vector<16x128xi32>
    %8 = vector.broadcast %0 : i32 to vector<16x128xi32>
    %9 = arith.addi %7, %8 : vector<16x128xi32>
    %10 = tpu.iota {dimensions = array<i32: 1>} : vector<16x128xi32>
    %c-1640531535_i32 = arith.constant -1640531535 : i32
    %11 = vector.broadcast %c-1640531535_i32 : i32 to vector<16x128xi32>
    %12 = arith.muli %9, %11 : vector<16x128xi32>
    %c-2048144777_i32 = arith.constant -2048144777 : i32
    %13 = vector.broadcast %c-2048144777_i32 : i32 to vector<16x128xi32>
    %14 = arith.muli %10, %13 : vector<16x128xi32>
    %15 = arith.xori %12, %14 : vector<16x128xi32>
    %c-1028477379_i32 = arith.constant -1028477379 : i32
    %16 = arith.muli %6, %c-1028477379_i32 : i32
    %17 = vector.broadcast %16 : i32 to vector<16x128xi32>
    %18 = arith.addi %15, %17 : vector<16x128xi32>
    %c16_i32_5 = arith.constant 16 : i32
    %19 = vector.broadcast %c16_i32_5 : i32 to vector<16x128xi32>
    %20 = arith.shrui %18, %19 : vector<16x128xi32>
    %21 = arith.xori %18, %20 : vector<16x128xi32>
    %c2146121005_i32 = arith.constant 2146121005 : i32
    %22 = vector.broadcast %c2146121005_i32 : i32 to vector<16x128xi32>
    %23 = arith.muli %21, %22 : vector<16x128xi32>
    %c15_i32 = arith.constant 15 : i32
    %24 = vector.broadcast %c15_i32 : i32 to vector<16x128xi32>
    %25 = arith.shrui %23, %24 : vector<16x128xi32>
    %26 = arith.xori %23, %25 : vector<16x128xi32>
    %c-2073254261_i32 = arith.constant -2073254261 : i32
    %27 = vector.broadcast %c-2073254261_i32 : i32 to vector<16x128xi32>
    %28 = arith.muli %26, %27 : vector<16x128xi32>
    %c16_i32_6 = arith.constant 16 : i32
    %29 = vector.broadcast %c16_i32_6 : i32 to vector<16x128xi32>
    %30 = arith.shrui %28, %29 : vector<16x128xi32>
    %31 = arith.xori %28, %30 : vector<16x128xi32>
    %c1_i32 = arith.constant 1 : i32
    %32 = vector.broadcast %c1_i32 : i32 to vector<16x128xi32>
    %33 = arith.andi %31, %32 : vector<16x128xi32>
    %c0_i32 = arith.constant 0 : i32
    %34 = vector.broadcast %c0_i32 : i32 to vector<16x128xi32>
    %35 = arith.cmpi eq, %33, %34 : vector<16x128xi32>
    %cst_7 = arith.constant 2.000000e+00 : f32
    %36 = vector.broadcast %cst_7 : f32 to vector<16x128xf32>
    %37 = arith.mulf %5, %36 : vector<16x128xf32>
    %cst_8 = arith.constant 0.000000e+00 : f32
    %38 = vector.broadcast %cst_8 : f32 to vector<16x128xf32>
    %39 = arith.select %35, %37, %38 : vector<16x128xi1>, vector<16x128xf32>
    %40 = arith.truncf %39 : vector<16x128xf32> to vector<16x128xbf16>
    %c0_9 = arith.constant 0 : index
    %c0_10 = arith.constant 0 : index
    %41 = vector.load %arg4[%c0_9, %c0_10] : memref<128x128xbf16, #tpu.memory_space<vmem>>, vector<128x128xbf16>
    %cst_11 = arith.constant dense<0.000000e+00> : vector<16x128xf32>
    %42 = tpu.matmul %40, %41, %cst_11 {dimension_numbers = #tpu.dot_dimension_numbers<[1], [0], [0], [1], [0, 0, 1, 1], [], []>} : vector<16x128xbf16>, vector<128x128xbf16>, vector<16x128xf32> -> vector<16x128xf32>
    %cst_12 = arith.constant 0.000000e+00 : f32
    %43 = vector.broadcast %cst_12 : f32 to vector<16x128xf32>
    %44 = arith.maximumf %42, %43 : vector<16x128xf32>
    %c1 = arith.constant 1 : index
    %45 = memref.load %arg1[%c1] : memref<2xi32, #tpu.memory_space<smem>>
    %46 = tpu.iota {dimensions = array<i32: 0>} : vector<16x128xi32>
    %47 = vector.broadcast %0 : i32 to vector<16x128xi32>
    %48 = arith.addi %46, %47 : vector<16x128xi32>
    %49 = tpu.iota {dimensions = array<i32: 1>} : vector<16x128xi32>
    %c-1640531535_i32_13 = arith.constant -1640531535 : i32
    %50 = vector.broadcast %c-1640531535_i32_13 : i32 to vector<16x128xi32>
    %51 = arith.muli %48, %50 : vector<16x128xi32>
    %c-2048144777_i32_14 = arith.constant -2048144777 : i32
    %52 = vector.broadcast %c-2048144777_i32_14 : i32 to vector<16x128xi32>
    %53 = arith.muli %49, %52 : vector<16x128xi32>
    %54 = arith.xori %51, %53 : vector<16x128xi32>
    %c-1028477379_i32_15 = arith.constant -1028477379 : i32
    %55 = arith.muli %45, %c-1028477379_i32_15 : i32
    %56 = vector.broadcast %55 : i32 to vector<16x128xi32>
    %57 = arith.addi %54, %56 : vector<16x128xi32>
    %c16_i32_16 = arith.constant 16 : i32
    %58 = vector.broadcast %c16_i32_16 : i32 to vector<16x128xi32>
    %59 = arith.shrui %57, %58 : vector<16x128xi32>
    %60 = arith.xori %57, %59 : vector<16x128xi32>
    %c2146121005_i32_17 = arith.constant 2146121005 : i32
    %61 = vector.broadcast %c2146121005_i32_17 : i32 to vector<16x128xi32>
    %62 = arith.muli %60, %61 : vector<16x128xi32>
    %c15_i32_18 = arith.constant 15 : i32
    %63 = vector.broadcast %c15_i32_18 : i32 to vector<16x128xi32>
    %64 = arith.shrui %62, %63 : vector<16x128xi32>
    %65 = arith.xori %62, %64 : vector<16x128xi32>
    %c-2073254261_i32_19 = arith.constant -2073254261 : i32
    %66 = vector.broadcast %c-2073254261_i32_19 : i32 to vector<16x128xi32>
    %67 = arith.muli %65, %66 : vector<16x128xi32>
    %c16_i32_20 = arith.constant 16 : i32
    %68 = vector.broadcast %c16_i32_20 : i32 to vector<16x128xi32>
    %69 = arith.shrui %67, %68 : vector<16x128xi32>
    %70 = arith.xori %67, %69 : vector<16x128xi32>
    %c1_i32_21 = arith.constant 1 : i32
    %71 = vector.broadcast %c1_i32_21 : i32 to vector<16x128xi32>
    %72 = arith.andi %70, %71 : vector<16x128xi32>
    %c0_i32_22 = arith.constant 0 : i32
    %73 = vector.broadcast %c0_i32_22 : i32 to vector<16x128xi32>
    %74 = arith.cmpi eq, %72, %73 : vector<16x128xi32>
    %cst_23 = arith.constant 2.000000e+00 : f32
    %75 = vector.broadcast %cst_23 : f32 to vector<16x128xf32>
    %76 = arith.mulf %44, %75 : vector<16x128xf32>
    %cst_24 = arith.constant 0.000000e+00 : f32
    %77 = vector.broadcast %cst_24 : f32 to vector<16x128xf32>
    %78 = arith.select %74, %76, %77 : vector<16x128xi1>, vector<16x128xf32>
    %c0_25 = arith.constant 0 : index
    %c0_26 = arith.constant 0 : index
    %79 = vector.load %arg5[%c0_25, %c0_26] : memref<16x128xf32, #tpu.memory_space<vmem>>, vector<16x128xf32>
    tpu.vector_store %arg5[%c0_25, %c0_26], %78 {strides = array<i32>} : memref<16x128xf32, #tpu.memory_space<vmem>>, vector<16x128xf32>,
    return
  }
  func.func @transform_0(%arg0: i32, %arg1: memref<2xi32, #tpu.memory_space<smem>>) -> (i32, i32) {
    %c0_i32 = arith.constant 0 : i32
    %c0_i32_0 = arith.constant 0 : i32
    return %arg0, %c0_i32 : i32, i32
  }
  func.func @transform_1(%arg0: i32, %arg1: memref<2xi32, #tpu.memory_space<smem>>) -> (i32, i32) {
    %c0_i32 = arith.constant 0 : i32
    %c0_i32_0 = arith.constant 0 : i32
    %c0_i32_1 = arith.constant 0 : i32
    return %c0_i32, %c0_i32_0 : i32, i32
  }
  func.func @transform_2(%arg0: i32, %arg1: memref<2xi32, #tpu.memory_space<smem>>) -> (i32, i32) {
    %c0_i32 = arith.constant 0 : i32
    %c0_i32_0 = arith.constant 0 : i32
    %c0_i32_1 = arith.constant 0 : i32
    return %c0_i32, %c0_i32_0 : i32, i32
  }
  func.func @transform_3(%arg0: i32, %arg1: memref<2xi32, #tpu.memory_space<smem>>) -> (i32, i32) {
    %c0_i32 = arith.constant 0 : i32
    %c0_i32_0 = arith.constant 0 : i32
    return %arg0, %c0_i32 : i32, i32
  }
}

</mosaic_0001>

<llo_original>
// kernel: tpu_custom_call.1
$region0: #{tpu_custom_call.1}
  #allocation0 [shape = 'u32[]', space=smem, size = 0x4, offset = 0x4, fixed_abs, tag = 'smem constant byte address 0x4 - core index']
  #allocation1 [shape = 'u32[144,128]{1,0:T(1,128)}', space=vmem, size = 0x12000, scoped, tag = 'internal scratch']
  #allocation2 [shape = 's32[1]{0}', space=sflag, size = 0x4, scoped, tag = 'scoped memory for tpu_custom_call.1']
  #allocation3 [shape = 'u8[512]{0}', space=smem, size = 0x200, scoped, tag = 'prefetched SMEM operand 0']
  %s0 = inlined_call_operand.hbm [shape: s32[2], index: 0, kind: input, shape index: {}]
  %s1 = inlined_call_operand.hbm [shape: bf16[16,128], index: 1, kind: input, shape index: {}]
  %s2 = inlined_call_operand.hbm [shape: bf16[128,128], index: 2, kind: input, shape index: {}]
  %s3 = inlined_call_operand.hbm [shape: bf16[128,128], index: 3, kind: input, shape index: {}]
  %s4 = inlined_call_operand.hbm [shape: f32[16,128], index: 4, kind: output, shape index: {}]
  %s5 = sld [smem:[#allocation0]]
  $region34: #{tpu_custom_call.1} parent=0
    _
  %s7 = ssub.s32 1, %s5
  %s8 = scalar_select 0, %s7, %s5
  %10 = dma.hbm_to_smem %s0, 16, [#allocation3], [#allocation2]
  %11 = dma.done [#allocation2], 16
  %12 = sfence
  $region1: #{tpu_custom_call.1} parent=0
    #allocation4 [shape = 'u8[4096]{0}', space=vmem, size = 0x1000, scoped, tag = 'input window, operand 1, single buffered']
    #allocation5 [shape = 's32[1]{0}', space=sflag, size = 0x4, scoped, tag = 'scoped memory for tpu_custom_call.1']
    #allocation6 [shape = 's32[1]{0}', space=sflag, size = 0x4, scoped, tag = 'scoped memory for tpu_custom_call.1']
    #allocation7 [shape = 'u8[32768]{0}', space=vmem, size = 0x8000, scoped, tag = 'input window, operand 2, single buffered']
    #allocation8 [shape = 's32[1]{0}', space=sflag, size = 0x4, scoped, tag = 'scoped memory for tpu_custom_call.1']
    #allocation9 [shape = 'u8[32768]{0}', space=vmem, size = 0x8000, scoped, tag = 'input window, operand 3, single buffered']
    #allocation10 [shape = 'u8[8192]{0}', space=vmem, size = 0x2000, scoped, tag = 'output window, operand 0, single buffered']
    %13 = vsyncpa [#allocation5], 0
    %14 = vsyncpa [#allocation8], 0
    %15 = vsyncpa [#allocation6], 0
    // Predicated region
    $region2: #{tpu_custom_call.1} parent=1 // pred_check
      _
    $region3: #{tpu_custom_call.1} parent=1 // pred_check_branch
      %17 = sbr.rel (0) target = $region5
    $region4: #{tpu_custom_call.1} parent=1 // pred_region
      %s19 = ssub.s32 128, 128
      %20 = vsyncadd [#allocation5], %s19
      %s21 = sshll.u32 [#allocation4], 4
      %s22 = int_to_ptr.vmem [resolvable:$true] %s21
      %27 = dma.hbm_to_vmem [thread:$0]  %s1, 128, %s22, [#allocation5], 64, 64, 4
    $region5: #{tpu_custom_call.1} parent=1 // pred_fallthru
      _
    // Predicated region
    $region6: #{tpu_custom_call.1} parent=1 // pred_check
      _
    $region7: #{tpu_custom_call.1} parent=1 // pred_check_branch
      %29 = sbr.rel (0) target = $region9
    $region8: #{tpu_custom_call.1} parent=1 // pred_region
      %s31 = ssub.s32 1024, 1024
      %32 = vsyncadd [#allocation8], %s31
      %s33 = sshll.u32 [#allocation7], 4
      %s34 = int_to_ptr.vmem [resolvable:$true] %s33
      %39 = dma.hbm_to_vmem [thread:$0]  %s2, 1024, %s34, [#allocation8], 64, 64, 4
    $region9: #{tpu_custom_call.1} parent=1 // pred_fallthru
      _
    // Predicated region
    $region10: #{tpu_custom_call.1} parent=1 // pred_check
      _
    $region11: #{tpu_custom_call.1} parent=1 // pred_check_branch
      %41 = sbr.rel (0) target = $region13
    $region12: #{tpu_custom_call.1} parent=1 // pred_region
      %s43 = ssub.s32 1024, 1024
      %44 = vsyncadd [#allocation8], %s43
      %s45 = sshll.u32 [#allocation9], 4
      %s46 = int_to_ptr.vmem [resolvable:$true] %s45
      %51 = dma.hbm_to_vmem [thread:$0]  %s3, 1024, %s46, [#allocation8], 64, 64, 4
    $region13: #{tpu_custom_call.1} parent=1 // pred_fallthru
      _
    // Predicated region
    $region14: #{tpu_custom_call.1} parent=1 // pred_check
      _
    $region15: #{tpu_custom_call.1} parent=1 // pred_check_branch
      %53 = sbr.rel (0) target = $region17
    $region16: #{tpu_custom_call.1} parent=1 // pred_region
      %54 = dma.done [#allocation5], 128
    $region17: #{tpu_custom_call.1} parent=1 // pred_fallthru
      _
    // Predicated region
    $region18: #{tpu_custom_call.1} parent=1 // pred_check
      _
    $region19: #{tpu_custom_call.1} parent=1 // pred_check_branch
      %56 = sbr.rel (0) target = $region21
    $region20: #{tpu_custom_call.1} parent=1 // pred_region
      %57 = dma.done [#allocation8], 1024
    $region21: #{tpu_custom_call.1} parent=1 // pred_fallthru
      _
    // Predicated region
    $region22: #{tpu_custom_call.1} parent=1 // pred_check
      _
    $region23: #{tpu_custom_call.1} parent=1 // pred_check_branch
      %59 = sbr.rel (0) target = $region25
    $region24: #{tpu_custom_call.1} parent=1 // pred_region
      %60 = dma.done [#allocation8], 1024
    $region25: #{tpu_custom_call.1} parent=1 // pred_fallthru
      _
    %s62 = smul.u32 0, 16
    %v63 = vld [vmem:[#allocation4] sm:$0xf]
    %v64 = vld [vmem:[#allocation4 + $0x4] sm:$0xf]
    %v65 = vld [vmem:[#allocation7] sm:$0xf]
    %v66 = vld [vmem:[#allocation7 + $0x4] sm:$0xf]
    %v67 = vld [vmem:[#allocation7 + $0x8] sm:$0xf]
    %v68 = vld [vmem:[#allocation7 + $0xc] sm:$0xf]
    %v69 = vld [vmem:[#allocation7 + $0x10] sm:$0xf]
    %v70 = vld [vmem:[#allocation7 + $0x14] sm:$0xf]
    %v71 = vld [vmem:[#allocation7 + $0x18] sm:$0xf]
    %v72 = vld [vmem:[#allocation7 + $0x1c] sm:$0xf]
    %v73 = vld [vmem:[#allocation7 + $0x20] sm:$0xf]
    %v74 = vld [vmem:[#allocation7 + $0x24] sm:$0xf]
    %v75 = vld [vmem:[#allocation7 + $0x28] sm:$0xf]
    %v76 = vld [vmem:[#allocation7 + $0x2c] sm:$0xf]
    %v77 = vld [vmem:[#allocation7 + $0x30] sm:$0xf]
    %v78 = vld [vmem:[#allocation7 + $0x34] sm:$0xf]
    %v79 = vld [vmem:[#allocation7 + $0x38] sm:$0xf]
    %v80 = vld [vmem:[#allocation7 + $0x3c] sm:$0xf]
    %v83 = vunpack.c.l.b16 %v63
    %v84 = vunpack.c.l.b16 %v64
    %v85 = vpack.c.b16 %v84, %v83
    %v103 = vunpack.c.l.b16 %v65
    %v104 = vunpack.c.l.b16 %v66
    %v105 = vunpack.c.l.b16 %v67
    %v106 = vunpack.c.l.b16 %v68
    %v107 = vunpack.c.l.b16 %v69
    %v108 = vunpack.c.l.b16 %v70
    %v109 = vunpack.c.l.b16 %v71
    %v110 = vunpack.c.l.b16 %v72
    %v111 = vunpack.c.l.b16 %v73
    %v112 = vunpack.c.l.b16 %v74
    %v113 = vunpack.c.l.b16 %v75
    %v114 = vunpack.c.l.b16 %v76
    %v115 = vunpack.c.l.b16 %v77
    %v116 = vunpack.c.l.b16 %v78
    %v117 = vunpack.c.l.b16 %v79
    %v118 = vunpack.c.l.b16 %v80
    %v119 = vpack.c.b16 %v104, %v103
    %v120 = vpack.c.b16 %v106, %v105
    %v121 = vpack.c.b16 %v108, %v107
    %v122 = vpack.c.b16 %v110, %v109
    %v123 = vpack.c.b16 %v112, %v111
    %v124 = vpack.c.b16 %v114, %v113
    %v125 = vpack.c.b16 %v116, %v115
    %v126 = vpack.c.b16 %v118, %v117
    %135 = vmatprep.subr.bf16.mxu0 0
    %136 = vmatpush1.bf16.msra.mxu0 %v126
    %137 = vmatprep.subr.bf16.mxu0 0
    %138 = vmatpush1.bf16.msra.mxu0 %v125
    %139 = vmatprep.subr.bf16.mxu0 0
    %140 = vmatpush1.bf16.msra.mxu0 %v124
    %141 = vmatprep.subr.bf16.mxu0 0
    %142 = vmatpush1.bf16.msra.mxu0 %v123
    %143 = vmatprep.subr.bf16.mxu0 0
    %144 = vmatpush1.bf16.msra.mxu0 %v122
    %145 = vmatprep.subr.bf16.mxu0 0
    %146 = vmatpush1.bf16.msra.mxu0 %v121
    %147 = vmatprep.subr.bf16.mxu0 0
    %148 = vmatpush1.bf16.msra.mxu0 %v120
    %149 = vmatprep.subr.bf16.mxu0 0
    %150 = vmatpush1.bf16.msra.mxu0 %v119
    %151 = vmatprep.subr.bf16.mxu0 0
    %152 = vmatpush2.bf16.msra.mxu0 0
    %153 = vmatprep.subr.bf16.mxu0 0
    %154 = vmatpush2.bf16.msra.mxu0 0
    %155 = vmatprep.subr.bf16.mxu0 0
    %156 = vmatpush2.bf16.msra.mxu0 0
    %157 = vmatprep.subr.bf16.mxu0 0
    %158 = vmatpush2.bf16.msra.mxu0 0
    %159 = vmatprep.subr.bf16.mxu0 0
    %160 = vmatpush2.bf16.msra.mxu0 0
    %161 = vmatprep.subr.bf16.mxu0 0
    %162 = vmatpush2.bf16.msra.mxu0 0
    %163 = vmatprep.subr.bf16.mxu0 0
    %164 = vmatpush2.bf16.msra.mxu0 0
    %165 = vmatprep.subr.bf16.mxu0 0
    %166 = vmatpush2.bf16.msra.mxu0 0
    %167 = vmatprep.mubr.bf16.mxu0 0
    %168 = vmatmul.mubr.bf16.gmra.mxu0 %v85
    %v169 = vpop.f32.mrf.mxu0
    %v170 = vadd.f32 0.0, %v169
    %v171 = vpop.f32.mrf.mxu0
    %v172 = vpop.f32.mrf.mxu0
    %v173 = vadd.f32 0.0, %v172
    %v174 = vpop.f32.mrf.mxu0
    %175 = vdwg.mxu0
    %v176 = vmax.f32 %v170, 0.0
    %v177 = vmax.f32 %v173, 0.0
    %s178 = sld [smem:[#allocation3]]
    %v179 = vlaneseq
    %v180 = vshrl.u32 %v179, 7
    %v181 = vadd.s32 %v180, 8
    %v182 = vstv %s62
    %v183 = vadd.s32 %v180, %v182
    %v184 = vadd.s32 %v181, %v182
    %v185 = vlaneseq
    %v186 = vand.u32 %v185, 127
    %v187 = vmul.u32 %v183, 2654435761
    %v188 = vmul.u32 %v184, 2654435761
    %v189 = vmul.u32 %v186, 2246822519
    %v190 = vxor.u32 %v187, %v189
    %v191 = vxor.u32 %v188, %v189
    %s192 = smul.u32 %s178, 3266489917
    %v193 = vstv %s192
    %v194 = vadd.s32 %v190, %v193
    %v195 = vadd.s32 %v191, %v193
    %v196 = vshrl.u32 %v194, 16
    %v197 = vshrl.u32 %v195, 16
    %v198 = vxor.u32 %v194, %v196
    %v199 = vxor.u32 %v195, %v197
    %v200 = vmul.u32 %v198, 2146121005
    %v201 = vmul.u32 %v199, 2146121005
    %v202 = vshrl.u32 %v200, 15
    %v203 = vshrl.u32 %v201, 15
    %v204 = vxor.u32 %v200, %v202
    %v205 = vxor.u32 %v201, %v203
    %v206 = vmul.u32 %v204, 2221713035
    %v207 = vmul.u32 %v205, 2221713035
    %v208 = vshrl.u32 %v206, 16
    %v209 = vshrl.u32 %v207, 16
    %v210 = vxor.u32 %v206, %v208
    %v211 = vxor.u32 %v207, %v209
    %v212 = vand.u32 %v210, 1
    %v213 = vand.u32 %v211, 1
    %vm214 = vcmp.eq.s32.totalorder %v212, 0
    %vm215 = vcmp.eq.s32.totalorder %v213, 0
    %v216 = vmul.f32 %v176, 2.0
    %v217 = vmul.f32 %v177, 2.0
    %v218 = vsel %vm214, %v216, 0.0
    %v219 = vsel %vm215, %v217, 0.0
    %v220 = vpack.c.bf16 %v219, %v218
    %v221 = vld [vmem:[#allocation9] sm:$0xf]
    %v222 = vld [vmem:[#allocation9 + $0x4] sm:$0xf]
    %v223 = vld [vmem:[#allocation9 + $0x8] sm:$0xf]
    %v224 = vld [vmem:[#allocation9 + $0xc] sm:$0xf]
    %v225 = vld [vmem:[#allocation9 + $0x10] sm:$0xf]
    %v226 = vld [vmem:[#allocation9 + $0x14] sm:$0xf]
    %v227 = vld [vmem:[#allocation9 + $0x18] sm:$0xf]
    %v228 = vld [vmem:[#allocation9 + $0x1c] sm:$0xf]
    %v229 = vld [vmem:[#allocation9 + $0x20] sm:$0xf]
    %v230 = vld [vmem:[#allocation9 + $0x24] sm:$0xf]
    %v231 = vld [vmem:[#allocation9 + $0x28] sm:$0xf]
    %v232 = vld [vmem:[#allocation9 + $0x2c] sm:$0xf]
    %v233 = vld [vmem:[#allocation9 + $0x30] sm:$0xf]
    %v234 = vld [vmem:[#allocation9 + $0x34] sm:$0xf]
    %v235 = vld [vmem:[#allocation9 + $0x38] sm:$0xf]
    %v236 = vld [vmem:[#allocation9 + $0x3c] sm:$0xf]
    %v253 = vunpack.c.l.b16 %v221
    %v254 = vunpack.c.l.b16 %v222
    %v255 = vunpack.c.l.b16 %v223
    %v256 = vunpack.c.l.b16 %v224
    %v257 = vunpack.c.l.b16 %v225
    %v258 = vunpack.c.l.b16 %v226
    %v259 = vunpack.c.l.b16 %v227
    %v260 = vunpack.c.l.b16 %v228
    %v261 = vunpack.c.l.b16 %v229
    %v262 = vunpack.c.l.b16 %v230
    %v263 = vunpack.c.l.b16 %v231
    %v264 = vunpack.c.l.b16 %v232
    %v265 = vunpack.c.l.b16 %v233
    %v266 = vunpack.c.l.b16 %v234
    %v267 = vunpack.c.l.b16 %v235
    %v268 = vunpack.c.l.b16 %v236
    %v269 = vpack.c.b16 %v254, %v253
    %v270 = vpack.c.b16 %v256, %v255
    %v271 = vpack.c.b16 %v258, %v257
    %v272 = vpack.c.b16 %v260, %v259
    %v273 = vpack.c.b16 %v262, %v261
    %v274 = vpack.c.b16 %v264, %v263
    %v275 = vpack.c.b16 %v266, %v265
    %v276 = vpack.c.b16 %v268, %v267
    %285 = vmatprep.subr.bf16.mxu0 0
    %286 = vmatpush1.bf16.msra.mxu0 %v276
    %287 = vmatprep.subr.bf16.mxu0 0
    %288 = vmatpush1.bf16.msra.mxu0 %v275
    %289 = vmatprep.subr.bf16.mxu0 0
    %290 = vmatpush1.bf16.msra.mxu0 %v274
    %291 = vmatprep.subr.bf16.mxu0 0
    %292 = vmatpush1.bf16.msra.mxu0 %v273
    %293 = vmatprep.subr.bf16.mxu0 0
    %294 = vmatpush1.bf16.msra.mxu0 %v272
    %295 = vmatprep.subr.bf16.mxu0 0
    %296 = vmatpush1.bf16.msra.mxu0 %v271
    %297 = vmatprep.subr.bf16.mxu0 0
    %298 = vmatpush1.bf16.msra.mxu0 %v270
    %299 = vmatprep.subr.bf16.mxu0 0
    %300 = vmatpush1.bf16.msra.mxu0 %v269
    %301 = vmatprep.subr.bf16.mxu0 0
    %302 = vmatpush2.bf16.msra.mxu0 0
    %303 = vmatprep.subr.bf16.mxu0 0
    %304 = vmatpush2.bf16.msra.mxu0 0
    %305 = vmatprep.subr.bf16.mxu0 0
    %306 = vmatpush2.bf16.msra.mxu0 0
    %307 = vmatprep.subr.bf16.mxu0 0
    %308 = vmatpush2.bf16.msra.mxu0 0
    %309 = vmatprep.subr.bf16.mxu0 0
    %310 = vmatpush2.bf16.msra.mxu0 0
    %311 = vmatprep.subr.bf16.mxu0 0
    %312 = vmatpush2.bf16.msra.mxu0 0
    %313 = vmatprep.subr.bf16.mxu0 0
    %314 = vmatpush2.bf16.msra.mxu0 0
    %315 = vmatprep.subr.bf16.mxu0 0
    %316 = vmatpush2.bf16.msra.mxu0 0
    %317 = vmatprep.mubr.bf16.mxu0 0
    %318 = vmatmul.mubr.bf16.gmra.mxu0 %v220
    %v319 = vpop.f32.mrf.mxu0
    %v320 = vadd.f32 0.0, %v319
    %v321 = vpop.f32.mrf.mxu0
    %v322 = vpop.f32.mrf.mxu0
    %v323 = vadd.f32 0.0, %v322
    %v324 = vpop.f32.mrf.mxu0
    %325 = vdwg.mxu0
    %v326 = vmax.f32 %v320, 0.0
    %v327 = vmax.f32 %v323, 0.0
    %s328 = sld [smem:[#allocation3 + $0x1]]
    %s329 = smul.u32 %s328, 3266489917
    %v330 = vstv %s329
    %v331 = vadd.s32 %v190, %v330
    %v332 = vadd.s32 %v191, %v330
    %v333 = vshrl.u32 %v331, 16
    %v334 = vshrl.u32 %v332, 16
    %v335 = vxor.u32 %v331, %v333
    %v336 = vxor.u32 %v332, %v334
    %v337 = vmul.u32 %v335, 2146121005
    %v338 = vmul.u32 %v336, 2146121005
    %v339 = vshrl.u32 %v337, 15
    %v340 = vshrl.u32 %v338, 15
    %v341 = vxor.u32 %v337, %v339
    %v342 = vxor.u32 %v338, %v340
    %v343 = vmul.u32 %v341, 2221713035
    %v344 = vmul.u32 %v342, 2221713035
    %v345 = vshrl.u32 %v343, 16
    %v346 = vshrl.u32 %v344, 16
    %v347 = vxor.u32 %v343, %v345
    %v348 = vxor.u32 %v344, %v346
    %v349 = vand.u32 %v347, 1
    %v350 = vand.u32 %v348, 1
    %vm351 = vcmp.eq.s32.totalorder %v349, 0
    %vm352 = vcmp.eq.s32.totalorder %v350, 0
    %v353 = vmul.f32 %v326, 2.0
    %v354 = vmul.f32 %v327, 2.0
    %v355 = vsel %vm351, %v353, 0.0
    %v356 = vsel %vm352, %v354, 0.0
    %357 = vst [vmem:[#allocation10] sm:$0xff] %v355
    %358 = vst [vmem:[#allocation10 + $0x8] sm:$0xff] %v356
    // Predicated region
    $region26: #{tpu_custom_call.1} parent=1 // pred_check
      _
    $region27: #{tpu_custom_call.1} parent=1 // pred_check_branch
      %360 = sbr.rel (0) target = $region29
    $region28: #{tpu_custom_call.1} parent=1 // pred_region
      %s362 = ssub.s32 256, 256
      %363 = vsyncadd [#allocation6], %s362
      %s364 = sshll.u32 [#allocation10], 4
      %s365 = int_to_ptr.vmem [resolvable:$true] %s364
      %370 = dma.vmem_to_hbm [thread:$0]  %s365, 256, %s4, [#allocation6], 128, 128, 8
    $region29: #{tpu_custom_call.1} parent=1 // pred_fallthru
      _
    // Predicated region
    $region30: #{tpu_custom_call.1} parent=1 // pred_check
      _
    $region31: #{tpu_custom_call.1} parent=1 // pred_check_branch
      %372 = sbr.rel (0) target = $region33
    $region32: #{tpu_custom_call.1} parent=1 // pred_region
      %373 = dma.done [#allocation6], 256
    $region33: #{tpu_custom_call.1} parent=1 // pred_fallthru
      _
    %374 = vsyncpa [#allocation5], 1
    %375 = vsyncpa [#allocation8], 1
    %376 = vsyncpa [#allocation6], 1

</llo_original>
